<compile_context>
chip_gen: v7x
topology: tpu7x:2x2x1
jax: 0.10.0
libtpu: 0.0.40
codegen_flags: <defaults>
</compile_context>

<pallas_src>
from functools import partial

import jax
import jax.numpy as jnp
from jax.experimental import pallas as pl
from jax.experimental.pallas import tpu as pltpu


def graph_attention_kernel(ft_ref, a1t_ref, a2_ref, a3_ref, rowsum_ref,
                           we_ref, be_ref, out_ref, *, num_heads, out_dim,
                           alpha, n_src, mxu_dtype, approx_recip):
    """One destination-node tile.

    ft_ref      (Ns, H*D)   fc(h) for every source node (resident across grid)
    a1t_ref     (H, Ns)     source attention coefficients, src on lanes
    a2_ref      (TD, H)     destination attention coefficients (this tile)
    a3_ref      (H, TD, Ns) edge logits ef @ attn_e (this tile), src on lanes
    rowsum_ref  (TD, Ein)   sum over sources of the incoming edge features
    we_ref      (Ein, H*D)  fc_e weight, be_ref (1, H*D) fc_e bias
    out_ref     (TD, H*D)
    """
    H, D = num_heads, out_dim
    f32 = jnp.float32

    def mm(a, b):                       # MXU matmul, f32 accumulation
        return jnp.dot(a.astype(mxu_dtype), b.astype(mxu_dtype),
                       preferred_element_type=f32)

    # sum over incoming edges of fc_e(edge): reduce over sources first
    # (linearity of fc_e), then a single small un-padded MXU matmul.
    sum_eft = mm(rowsum_ref[...], we_ref[...]) + n_src * be_ref[...]   # (TD, HD)

    ft = ft_ref[...]                    # (Ns, HD)
    a1t = a1t_ref[...]                  # (H, Ns)
    a2 = a2_ref[...]                    # (TD, H)

    # Per-head edge softmax + aggregation.  H is a tiny static constant; all
    # per-head work is vectorized over the full (TD, Ns) block with the source
    # axis on lanes, aggregation on the MXU.
    aggs = []
    for h in range(H):
        s = a1t[h:h + 1, :] + a2[:, h:h + 1] + a3_ref[h]     # (TD, Ns)
        s = jnp.where(s > 0, s, alpha * s)                   # LeakyReLU(alpha)
        m = jnp.max(s, axis=-1, keepdims=True)               # (TD, 1)
        p = jnp.exp(s - m)
        z = jnp.sum(p, axis=-1, keepdims=True)               # (TD, 1)
        attn = p * pl.reciprocal(z, approx=approx_recip)     # (TD, Ns)
        aggs.append(mm(attn, ft[:, h * D:(h + 1) * D]))      # (TD, D)  MXU
    # Single lane-dense store of the whole destination tile.  (HD < 128 lanes
    # lowers to one masked store per tile; acceptable.)
    out_ref[...] = (jnp.concatenate(aggs, axis=-1) + sum_eft).astype(out_ref.dtype)


def graph_attention(x, ef, params, *, num_heads, out_dim, alpha,
                    tile_dst=128, mxu_dtype=jnp.float32, approx_recip=False):
    N, in_dim = x.shape
    E, edge_in = ef.shape
    H, D = num_heads, out_dim
    HD = H * D
    assert E == N * N, "expects fully-connected graph, dst-major edge order"
    TD = min(tile_dst, N)
    assert N % TD == 0 and TD % 8 == 0
    grid = (N // TD,)
    f32 = jnp.float32

    # ---- grid-invariant source-side precompute (plain XLA, done once) ----
    ft = x @ params["W"] + params["b"]                          # (N, HD)
    ft3 = ft.reshape(N, H, D)
    a1t = jnp.einsum("nhd,hd->hn", ft3, params["al"])           # (H, N) src-on-lanes
    a2 = jnp.einsum("nhd,hd->nh", ft3, params["ar"])            # (N, H)
    ef3 = ef.reshape(N, N, edge_in)                             # (dst, src, ein)
    a3 = jnp.transpose((ef @ params["ae"]).reshape(N, N, H),
                       (2, 0, 1))                               # (H, dst, src)
    rowsum = jnp.sum(ef3, axis=1)                               # (dst, ein)

    kernel = partial(graph_attention_kernel, num_heads=H, out_dim=D,
                     alpha=alpha, n_src=N, mxu_dtype=mxu_dtype,
                     approx_recip=approx_recip)

    in_specs = [
        pl.BlockSpec((N, HD), lambda i: (0, 0)),           # ft   (all sources)
        pl.BlockSpec((H, N), lambda i: (0, 0)),            # a1^T (src on lanes)
        pl.BlockSpec((TD, H), lambda i: (i, 0)),           # a2   dst tile
        pl.BlockSpec((H, TD, N), lambda i: (0, i, 0)),     # a3   dst tile
        pl.BlockSpec((TD, edge_in), lambda i: (i, 0)),     # rowsum dst tile
        pl.BlockSpec((edge_in, HD), lambda i: (0, 0)),     # We
        pl.BlockSpec((1, HD), lambda i: (0, 0)),           # be
    ]
    out_specs = pl.BlockSpec((TD, HD), lambda i: (i, 0))

    # VMEM budget derived from the actual footprint (resident invariants +
    # double-buffered streamed tiles), clamped to stay within v7x's 64 MiB /
    # v5e-v6e's 128 MiB physical capacity.
    b4 = 4
    resident = (N * HD + H * N + edge_in * HD + HD) * b4
    streamed = (H * TD * N + TD * H + TD * edge_in + TD * HD) * b4
    vmem_limit = int(min(max(2 * resident + 2 * streamed + (1 << 20), 8 << 20),
                         48 << 20))

    return pl.pallas_call(
        kernel,
        out_shape=jax.ShapeDtypeStruct((N, HD), f32),
        grid=grid,
        in_specs=in_specs,
        out_specs=out_specs,
        compiler_params=pltpu.CompilerParams(
            dimension_semantics=("parallel",),
            vmem_limit_bytes=vmem_limit,
        ),
    )(ft, a1t, a2, a3, rowsum, params["We"], params["be"])


def reference(x, ef, params, *, num_heads, out_dim, alpha):
    """Pure-JAX dense re-implementation of the PyTorch forward (for checking)."""
    N = x.shape[0]
    H, D = num_heads, out_dim
    ft = x @ params["W"] + params["b"]                       # (N, H*D)
    ft3 = ft.reshape(N, H, D)
    a1 = jnp.einsum("nhd,hd->nh", ft3, params["al"])         # (N, H)
    a2 = jnp.einsum("nhd,hd->nh", ft3, params["ar"])         # (N, H)
    a3 = (ef @ params["ae"]).reshape(N, N, H)                # (dst, src, H)
    score = a1[None, :, :] + a2[:, None, :] + a3
    score = jnp.where(score > 0, score, alpha * score)
    m = score.max(axis=1, keepdims=True)
    p = jnp.exp(score - m)
    z = p.sum(axis=1, keepdims=True)
    attn = p / z                                             # (dst, src, H)
    agg = jnp.einsum("dsh,shk->dhk", attn, ft3)              # (dst, H, D)
    eft = ef @ params["We"] + params["be"]                   # (E, H*D)
    sum_eft = eft.reshape(N, N, H * D).sum(axis=1)           # (dst, H*D)
    return agg.reshape(N, H * D) + sum_eft


if __name__ == "__main__":
    N, in_dim, edge_in_dim, H, D = 32, 16, 8, 4, 16
    alpha = 0.2

    key = jax.random.PRNGKey(0)
    ks = jax.random.split(key, 9)
    x = jax.random.normal(ks[0], (N, in_dim), jnp.float32)
    ef = jax.random.normal(ks[1], (N * N, edge_in_dim), jnp.float32)

    # deterministic synthetic parameters (xavier-ish scale 0.1, as in the module)
    params = dict(
        W=0.1 * jax.random.normal(ks[2], (in_dim, H * D), jnp.float32),
        b=0.1 * jax.random.normal(ks[3], (1, H * D), jnp.float32),
        We=0.1 * jax.random.normal(ks[4], (edge_in_dim, H * D), jnp.float32),
        be=0.1 * jax.random.normal(ks[5], (1, H * D), jnp.float32),
        al=0.1 * jax.random.normal(ks[6], (H, D), jnp.float32),
        ar=0.1 * jax.random.normal(ks[7], (H, D), jnp.float32),
        ae=0.1 * jax.random.normal(ks[8], (edge_in_dim, H), jnp.float32),
    )

    # tile_dst=16 -> grid=(2,) so the parallel axis is exercised even at this
    # small N; production configs use the default tile_dst=128.
    out = graph_attention(x, ef, params, num_heads=H, out_dim=D, alpha=alpha,
                          tile_dst=16)
    jax.block_until_ready(out)

    ref = reference(x, ef, params, num_heads=H, out_dim=D, alpha=alpha)
    assert out.shape == (N, H * D)
    assert jnp.allclose(out, ref, atol=1e-4, rtol=1e-4), (
        f"max abs err {jnp.max(jnp.abs(out - ref))}")

    print("KERNEL_OK")
</pallas_src>

<mosaic_0001>
module attributes {stable_mosaic.version = 11 : i64} {
  func.func @graph_attention_kernel(%arg0: i32, %arg1: memref<32x64xf32, #tpu.memory_space<vmem>>, %arg2: memref<4x32xf32, #tpu.memory_space<vmem>>, %arg3: memref<16x4xf32, #tpu.memory_space<vmem>>, %arg4: memref<4x16x32xf32, #tpu.memory_space<vmem>>, %arg5: memref<16x8xf32, #tpu.memory_space<vmem>>, %arg6: memref<8x64xf32, #tpu.memory_space<vmem>>, %arg7: memref<1x64xf32, #tpu.memory_space<vmem>>, %arg8: memref<16x64xf32, #tpu.memory_space<vmem>>) attributes {dimension_semantics = [#tpu.dimension_semantics<parallel>], iteration_bounds = array<i64: 2>, scalar_prefetch = 0 : i64, scratch_operands = 0 : i64, tpu.core_type = #tpu.core_type<tc>, window_params = [{pipeline_mode = #tpu.pipeline_mode<synchronous>, transform_indices = @transform_0, window_bounds = array<i64: 32, 64>}, {pipeline_mode = #tpu.pipeline_mode<synchronous>, transform_indices = @transform_1, window_bounds = array<i64: 4, 32>}, {transform_indices = @transform_2, window_bounds = array<i64: 16, 4>}, {transform_indices = @transform_3, window_bounds = array<i64: 4, 16, 32>}, {transform_indices = @transform_4, window_bounds = array<i64: 16, 8>}, {pipeline_mode = #tpu.pipeline_mode<synchronous>, transform_indices = @transform_5, window_bounds = array<i64: 8, 64>}, {pipeline_mode = #tpu.pipeline_mode<synchronous>, transform_indices = @transform_6, window_bounds = array<i64: 1, 64>}, {transform_indices = @transform_7, window_bounds = array<i64: 16, 64>}]} {
    %c0 = arith.constant 0 : index
    %c0_0 = arith.constant 0 : index
    %0 = vector.load %arg5[%c0, %c0_0] : memref<16x8xf32, #tpu.memory_space<vmem>>, vector<16x8xf32>
    %c0_1 = arith.constant 0 : index
    %c0_2 = arith.constant 0 : index
    %1 = vector.load %arg6[%c0_1, %c0_2] : memref<8x64xf32, #tpu.memory_space<vmem>>, vector<8x64xf32>
    %cst = arith.constant dense<0.000000e+00> : vector<16x64xf32>
    %2 = tpu.matmul %0, %1, %cst {dimension_numbers = #tpu.dot_dimension_numbers<[1], [0], [0], [1], [0, 0, 1, 1], [], []>} : vector<16x8xf32>, vector<8x64xf32>, vector<16x64xf32> -> vector<16x64xf32>
    %c0_3 = arith.constant 0 : index
    %c0_4 = arith.constant 0 : index
    %3 = vector.load %arg7[%c0_3, %c0_4] : memref<1x64xf32, #tpu.memory_space<vmem>>, vector<1x64xf32>
    %cst_5 = arith.constant 3.200000e+01 : f32
    %4 = vector.broadcast %cst_5 : f32 to vector<1x64xf32>
    %5 = arith.mulf %4, %3 : vector<1x64xf32>
    %6 = vector.broadcast %5 : vector<1x64xf32> to vector<16x64xf32>
    %7 = arith.addf %2, %6 : vector<16x64xf32>
    %c0_6 = arith.constant 0 : index
    %c0_7 = arith.constant 0 : index
    %8 = vector.load %arg1[%c0_6, %c0_7] : memref<32x64xf32, #tpu.memory_space<vmem>>, vector<32x64xf32>
    %c0_8 = arith.constant 0 : index
    %c0_9 = arith.constant 0 : index
    %9 = vector.load %arg2[%c0_8, %c0_9] : memref<4x32xf32, #tpu.memory_space<vmem>>, vector<4x32xf32>
    %c0_10 = arith.constant 0 : index
    %c0_11 = arith.constant 0 : index
    %10 = vector.load %arg3[%c0_10, %c0_11] : memref<16x4xf32, #tpu.memory_space<vmem>>, vector<16x4xf32>
    %11 = vector.extract_strided_slice %9 {offsets = [0, 0], sizes = [1, 32], strides = [1, 1]} : vector<4x32xf32> to vector<1x32xf32>
    %12 = vector.extract_strided_slice %10 {offsets = [0, 0], sizes = [16, 1], strides = [1, 1]} : vector<16x4xf32> to vector<16x1xf32>
    %13 = vector.broadcast %11 : vector<1x32xf32> to vector<16x32xf32>
    %14 = vector.broadcast %12 : vector<16x1xf32> to vector<16x32xf32>
    %15 = arith.addf %13, %14 : vector<16x32xf32>
    %c0_12 = arith.constant 0 : index
    %c0_13 = arith.constant 0 : index
    %c0_14 = arith.constant 0 : index
    %16 = vector.load %arg4[%c0_12, %c0_13, %c0_14] : memref<4x16x32xf32, #tpu.memory_space<vmem>>, vector<1x16x32xf32>
    %17 = vector.shape_cast %16 : vector<1x16x32xf32> to vector<16x32xf32>
    %18 = arith.addf %15, %17 : vector<16x32xf32>
    %cst_15 = arith.constant 0.000000e+00 : f32
    %19 = vector.broadcast %cst_15 : f32 to vector<16x32xf32>
    %20 = arith.cmpf ogt, %18, %19 : vector<16x32xf32>
    %cst_16 = arith.constant 2.000000e-01 : f32
    %21 = vector.broadcast %cst_16 : f32 to vector<16x32xf32>
    %22 = arith.mulf %21, %18 : vector<16x32xf32>
    %23 = arith.select %20, %18, %22 : vector<16x32xi1>, vector<16x32xf32>
    %cst_17 = arith.constant dense<0xFF800000> : vector<16xf32>
    %24 = vector.multi_reduction <maximumf>, %23, %cst_17 [1] : vector<16x32xf32> to vector<16xf32>
    %25 = vector.shape_cast %24 : vector<16xf32> to vector<16x1xf32>
    %26 = vector.broadcast %25 : vector<16x1xf32> to vector<16x32xf32>
    %27 = arith.subf %23, %26 : vector<16x32xf32>
    %28 = math.exp %27 : vector<16x32xf32>
    %cst_18 = arith.constant dense<0.000000e+00> : vector<16xf32>
    %29 = vector.multi_reduction <add>, %28, %cst_18 [1] : vector<16x32xf32> to vector<16xf32>
    %30 = vector.shape_cast %29 : vector<16xf32> to vector<16x1xf32>
    %31 = tpu.reciprocal %30 : vector<16x1xf32> -> vector<16x1xf32>
    %32 = vector.broadcast %31 : vector<16x1xf32> to vector<16x32xf32>
    %33 = arith.mulf %28, %32 : vector<16x32xf32>
    %34 = vector.extract_strided_slice %8 {offsets = [0, 0], sizes = [32, 16], strides = [1, 1]} : vector<32x64xf32> to vector<32x16xf32>
    %cst_19 = arith.constant dense<0.000000e+00> : vector<16x16xf32>
    %35 = tpu.matmul %33, %34, %cst_19 {dimension_numbers = #tpu.dot_dimension_numbers<[1], [0], [0], [1], [0, 0, 1, 1], [], []>} : vector<16x32xf32>, vector<32x16xf32>, vector<16x16xf32> -> vector<16x16xf32>
    %36 = vector.extract_strided_slice %9 {offsets = [1, 0], sizes = [1, 32], strides = [1, 1]} : vector<4x32xf32> to vector<1x32xf32>
    %37 = vector.extract_strided_slice %10 {offsets = [0, 1], sizes = [16, 1], strides = [1, 1]} : vector<16x4xf32> to vector<16x1xf32>
    %38 = vector.broadcast %36 : vector<1x32xf32> to vector<16x32xf32>
    %39 = vector.broadcast %37 : vector<16x1xf32> to vector<16x32xf32>
    %40 = arith.addf %38, %39 : vector<16x32xf32>
    %c1 = arith.constant 1 : index
    %c0_20 = arith.constant 0 : index
    %c0_21 = arith.constant 0 : index
    %41 = vector.load %arg4[%c1, %c0_20, %c0_21] : memref<4x16x32xf32, #tpu.memory_space<vmem>>, vector<1x16x32xf32>
    %42 = vector.shape_cast %41 : vector<1x16x32xf32> to vector<16x32xf32>
    %43 = arith.addf %40, %42 : vector<16x32xf32>
    %cst_22 = arith.constant 0.000000e+00 : f32
    %44 = vector.broadcast %cst_22 : f32 to vector<16x32xf32>
    %45 = arith.cmpf ogt, %43, %44 : vector<16x32xf32>
    %cst_23 = arith.constant 2.000000e-01 : f32
    %46 = vector.broadcast %cst_23 : f32 to vector<16x32xf32>
    %47 = arith.mulf %46, %43 : vector<16x32xf32>
    %48 = arith.select %45, %43, %47 : vector<16x32xi1>, vector<16x32xf32>
    %cst_24 = arith.constant dense<0xFF800000> : vector<16xf32>
    %49 = vector.multi_reduction <maximumf>, %48, %cst_24 [1] : vector<16x32xf32> to vector<16xf32>
    %50 = vector.shape_cast %49 : vector<16xf32> to vector<16x1xf32>
    %51 = vector.broadcast %50 : vector<16x1xf32> to vector<16x32xf32>
    %52 = arith.subf %48, %51 : vector<16x32xf32>
    %53 = math.exp %52 : vector<16x32xf32>
    %cst_25 = arith.constant dense<0.000000e+00> : vector<16xf32>
    %54 = vector.multi_reduction <add>, %53, %cst_25 [1] : vector<16x32xf32> to vector<16xf32>
    %55 = vector.shape_cast %54 : vector<16xf32> to vector<16x1xf32>
    %56 = tpu.reciprocal %55 : vector<16x1xf32> -> vector<16x1xf32>
    %57 = vector.broadcast %56 : vector<16x1xf32> to vector<16x32xf32>
    %58 = arith.mulf %53, %57 : vector<16x32xf32>
    %59 = vector.extract_strided_slice %8 {offsets = [0, 16], sizes = [32, 16], strides = [1, 1]} : vector<32x64xf32> to vector<32x16xf32>
    %cst_26 = arith.constant dense<0.000000e+00> : vector<16x16xf32>
    %60 = tpu.matmul %58, %59, %cst_26 {dimension_numbers = #tpu.dot_dimension_numbers<[1], [0], [0], [1], [0, 0, 1, 1], [], []>} : vector<16x32xf32>, vector<32x16xf32>, vector<16x16xf32> -> vector<16x16xf32>
    %61 = vector.extract_strided_slice %9 {offsets = [2, 0], sizes = [1, 32], strides = [1, 1]} : vector<4x32xf32> to vector<1x32xf32>
    %62 = vector.extract_strided_slice %10 {offsets = [0, 2], sizes = [16, 1], strides = [1, 1]} : vector<16x4xf32> to vector<16x1xf32>
    %63 = vector.broadcast %61 : vector<1x32xf32> to vector<16x32xf32>
    %64 = vector.broadcast %62 : vector<16x1xf32> to vector<16x32xf32>
    %65 = arith.addf %63, %64 : vector<16x32xf32>
    %c2 = arith.constant 2 : index
    %c0_27 = arith.constant 0 : index
    %c0_28 = arith.constant 0 : index
    %66 = vector.load %arg4[%c2, %c0_27, %c0_28] : memref<4x16x32xf32, #tpu.memory_space<vmem>>, vector<1x16x32xf32>
    %67 = vector.shape_cast %66 : vector<1x16x32xf32> to vector<16x32xf32>
    %68 = arith.addf %65, %67 : vector<16x32xf32>
    %cst_29 = arith.constant 0.000000e+00 : f32
    %69 = vector.broadcast %cst_29 : f32 to vector<16x32xf32>
    %70 = arith.cmpf ogt, %68, %69 : vector<16x32xf32>
    %cst_30 = arith.constant 2.000000e-01 : f32
    %71 = vector.broadcast %cst_30 : f32 to vector<16x32xf32>
    %72 = arith.mulf %71, %68 : vector<16x32xf32>
    %73 = arith.select %70, %68, %72 : vector<16x32xi1>, vector<16x32xf32>
    %cst_31 = arith.constant dense<0xFF800000> : vector<16xf32>
    %74 = vector.multi_reduction <maximumf>, %73, %cst_31 [1] : vector<16x32xf32> to vector<16xf32>
    %75 = vector.shape_cast %74 : vector<16xf32> to vector<16x1xf32>
    %76 = vector.broadcast %75 : vector<16x1xf32> to vector<16x32xf32>
    %77 = arith.subf %73, %76 : vector<16x32xf32>
    %78 = math.exp %77 : vector<16x32xf32>
    %cst_32 = arith.constant dense<0.000000e+00> : vector<16xf32>
    %79 = vector.multi_reduction <add>, %78, %cst_32 [1] : vector<16x32xf32> to vector<16xf32>
    %80 = vector.shape_cast %79 : vector<16xf32> to vector<16x1xf32>
    %81 = tpu.reciprocal %80 : vector<16x1xf32> -> vector<16x1xf32>
    %82 = vector.broadcast %81 : vector<16x1xf32> to vector<16x32xf32>
    %83 = arith.mulf %78, %82 : vector<16x32xf32>
    %84 = vector.extract_strided_slice %8 {offsets = [0, 32], sizes = [32, 16], strides = [1, 1]} : vector<32x64xf32> to vector<32x16xf32>
    %cst_33 = arith.constant dense<0.000000e+00> : vector<16x16xf32>
    %85 = tpu.matmul %83, %84, %cst_33 {dimension_numbers = #tpu.dot_dimension_numbers<[1], [0], [0], [1], [0, 0, 1, 1], [], []>} : vector<16x32xf32>, vector<32x16xf32>, vector<16x16xf32> -> vector<16x16xf32>
    %86 = vector.extract_strided_slice %9 {offsets = [3, 0], sizes = [1, 32], strides = [1, 1]} : vector<4x32xf32> to vector<1x32xf32>
    %87 = vector.extract_strided_slice %10 {offsets = [0, 3], sizes = [16, 1], strides = [1, 1]} : vector<16x4xf32> to vector<16x1xf32>
    %88 = vector.broadcast %86 : vector<1x32xf32> to vector<16x32xf32>
    %89 = vector.broadcast %87 : vector<16x1xf32> to vector<16x32xf32>
    %90 = arith.addf %88, %89 : vector<16x32xf32>
    %c3 = arith.constant 3 : index
    %c0_34 = arith.constant 0 : index
    %c0_35 = arith.constant 0 : index
    %91 = vector.load %arg4[%c3, %c0_34, %c0_35] : memref<4x16x32xf32, #tpu.memory_space<vmem>>, vector<1x16x32xf32>
    %92 = vector.shape_cast %91 : vector<1x16x32xf32> to vector<16x32xf32>
    %93 = arith.addf %90, %92 : vector<16x32xf32>
    %cst_36 = arith.constant 0.000000e+00 : f32
    %94 = vector.broadcast %cst_36 : f32 to vector<16x32xf32>
    %95 = arith.cmpf ogt, %93, %94 : vector<16x32xf32>
    %cst_37 = arith.constant 2.000000e-01 : f32
    %96 = vector.broadcast %cst_37 : f32 to vector<16x32xf32>
    %97 = arith.mulf %96, %93 : vector<16x32xf32>
    %98 = arith.select %95, %93, %97 : vector<16x32xi1>, vector<16x32xf32>
    %cst_38 = arith.constant dense<0xFF800000> : vector<16xf32>
    %99 = vector.multi_reduction <maximumf>, %98, %cst_38 [1] : vector<16x32xf32> to vector<16xf32>
    %100 = vector.shape_cast %99 : vector<16xf32> to vector<16x1xf32>
    %101 = vector.broadcast %100 : vector<16x1xf32> to vector<16x32xf32>
    %102 = arith.subf %98, %101 : vector<16x32xf32>
    %103 = math.exp %102 : vector<16x32xf32>
    %cst_39 = arith.constant dense<0.000000e+00> : vector<16xf32>
    %104 = vector.multi_reduction <add>, %103, %cst_39 [1] : vector<16x32xf32> to vector<16xf32>
    %105 = vector.shape_cast %104 : vector<16xf32> to vector<16x1xf32>
    %106 = tpu.reciprocal %105 : vector<16x1xf32> -> vector<16x1xf32>
    %107 = vector.broadcast %106 : vector<16x1xf32> to vector<16x32xf32>
    %108 = arith.mulf %103, %107 : vector<16x32xf32>
    %109 = vector.extract_strided_slice %8 {offsets = [0, 48], sizes = [32, 16], strides = [1, 1]} : vector<32x64xf32> to vector<32x16xf32>
    %cst_40 = arith.constant dense<0.000000e+00> : vector<16x16xf32>
    %110 = tpu.matmul %108, %109, %cst_40 {dimension_numbers = #tpu.dot_dimension_numbers<[1], [0], [0], [1], [0, 0, 1, 1], [], []>} : vector<16x32xf32>, vector<32x16xf32>, vector<16x16xf32> -> vector<16x16xf32>
    %111 = tpu.concatenate %35, %60, %85, %110 in 1 : vector<16x16xf32>, vector<16x16xf32>, vector<16x16xf32>, vector<16x16xf32> -> vector<16x64xf32>
    %112 = arith.addf %111, %7 : vector<16x64xf32>
    %c0_41 = arith.constant 0 : index
    %c0_42 = arith.constant 0 : index
    %113 = vector.load %arg8[%c0_41, %c0_42] : memref<16x64xf32, #tpu.memory_space<vmem>>, vector<16x64xf32>
    tpu.vector_store %arg8[%c0_41, %c0_42], %112 {strides = array<i32>} : memref<16x64xf32, #tpu.memory_space<vmem>>, vector<16x64xf32>,
    return
  }
  func.func @transform_0(%arg0: i32) -> (i32, i32) {
    %c0_i32 = arith.constant 0 : i32
    %c0_i32_0 = arith.constant 0 : i32
    %c0_i32_1 = arith.constant 0 : i32
    return %c0_i32, %c0_i32_0 : i32, i32
  }
  func.func @transform_1(%arg0: i32) -> (i32, i32) {
    %c0_i32 = arith.constant 0 : i32
    %c0_i32_0 = arith.constant 0 : i32
    %c0_i32_1 = arith.constant 0 : i32
    return %c0_i32, %c0_i32_0 : i32, i32
  }
  func.func @transform_2(%arg0: i32) -> (i32, i32) {
    %c0_i32 = arith.constant 0 : i32
    %c0_i32_0 = arith.constant 0 : i32
    return %arg0, %c0_i32 : i32, i32
  }
  func.func @transform_3(%arg0: i32) -> (i32, i32, i32) {
    %c0_i32 = arith.constant 0 : i32
    %c0_i32_0 = arith.constant 0 : i32
    %c0_i32_1 = arith.constant 0 : i32
    return %c0_i32, %arg0, %c0_i32_0 : i32, i32, i32
  }
  func.func @transform_4(%arg0: i32) -> (i32, i32) {
    %c0_i32 = arith.constant 0 : i32
    %c0_i32_0 = arith.constant 0 : i32
    return %arg0, %c0_i32 : i32, i32
  }
  func.func @transform_5(%arg0: i32) -> (i32, i32) {
    %c0_i32 = arith.constant 0 : i32
    %c0_i32_0 = arith.constant 0 : i32
    %c0_i32_1 = arith.constant 0 : i32
    return %c0_i32, %c0_i32_0 : i32, i32
  }
  func.func @transform_6(%arg0: i32) -> (i32, i32) {
    %c0_i32 = arith.constant 0 : i32
    %c0_i32_0 = arith.constant 0 : i32
    %c0_i32_1 = arith.constant 0 : i32
    return %c0_i32, %c0_i32_0 : i32, i32
  }
  func.func @transform_7(%arg0: i32) -> (i32, i32) {
    %c0_i32 = arith.constant 0 : i32
    %c0_i32_0 = arith.constant 0 : i32
    return %arg0, %c0_i32 : i32, i32
  }
}

</mosaic_0001>

<llo_original>
// kernel: tpu_custom_call.1
$region0: #{tpu_custom_call.1}
  #allocation0 [shape = 'u32[]', space=smem, size = 0x4, offset = 0x4, fixed_abs, tag = 'smem constant byte address 0x4 - core index']
  #allocation1 [shape = 'u32[144,128]{1,0:T(1,128)}', space=vmem, size = 0x12000, scoped, tag = 'internal scratch']
  #allocation6 [shape = 's32[]', space=sflag, size = 0x4, offset = 0, fixed_abs, tag = 'sflag constant byte address 0x0 - dummy sync flag']
  %s0 = inlined_call_operand.vmem [shape: f32[32,64], index: 0, kind: input, shape index: {}]
  %s1 = inlined_call_operand.vmem [shape: f32[4,32], index: 1, kind: input, shape index: {}]
  %s2 = inlined_call_operand.vmem [shape: f32[32,4], index: 2, kind: input, shape index: {}]
  %s3 = inlined_call_operand.hbm [shape: f32[4,32,32], index: 3, kind: input, shape index: {}]
  %s4 = inlined_call_operand.vmem [shape: f32[32,8], index: 4, kind: input, shape index: {}]
  %s5 = inlined_call_operand.vmem [shape: f32[8,64], index: 5, kind: input, shape index: {}]
  %s6 = inlined_call_operand.vmem [shape: f32[1,64], index: 6, kind: input, shape index: {}]
  %s7 = inlined_call_operand.hbm [shape: f32[32,64], index: 7, kind: output, shape index: {}]
  %s8 = sld [smem:[#allocation0]]
  $region65: #{tpu_custom_call.1} parent=0
    _
  %s10 = ssub.s32 1, %s8
  %s11 = scalar_select 0, %s10, %s8
  $region1: #{tpu_custom_call.1} parent=0
    #allocation2 [shape = 'u8[65536]{0}', space=vmem, size = 0x10000, scoped, tag = 'input window, operand 3']
    #allocation3 [shape = 's32[2]{0}', space=sflag, size = 0x8, scoped, tag = 'scoped memory for tpu_custom_call.1']
    #allocation4 [shape = 's32[2]{0}', space=sflag, size = 0x8, scoped, tag = 'scoped memory for tpu_custom_call.1']
    #allocation5 [shape = 'u8[16384]{0}', space=vmem, size = 0x4000, scoped, tag = 'output window, operand 0']
    %12 = vsyncpa [#allocation3], 0
    %s13 = scalar_lea.sflag [#allocation3], 1
    %14 = vsyncpa %s13, 0
    %15 = vsyncpa [#allocation4], 0
    %s16 = scalar_lea.sflag [#allocation4], 1
    %17 = vsyncpa %s16, 0
    loop: start=0, step=1, limit=4
    $region2: #{tpu_custom_call.1} parent=1 // loop_pre_header
      _
    $region3: #{tpu_custom_call.1} parent=1 // loop_header
      %s19 = sphi 0, %s23
      %p20 = scmp.ge.s32.totalorder %s19, 4
      %s27 = sphi 0, %s27
      %s29 = sphi 0, %s27
      %s30 = sphi 0, %s29
      %s44 = sphi 0, %s30
      %s48 = sphi 0, %s48
      %s50 = sphi 0, %s48
      %s51 = sphi 0, %s50
      %s65 = sphi 0, %s51
      %s71 = sphi 0, %s73
      %s74 = sphi 0, %s71
      %s75 = sphi 0, %s74
      %s91 = sphi 0, %s75
      %s97 = sphi 0, %s99
      %s100 = sphi 0, %s97
      %s101 = sphi 0, %s100
      %s117 = sphi 0, %s101
      %s123 = sphi 0, %s125
      %s126 = sphi 0, %s123
      %s127 = sphi 0, %s126
      %s143 = sphi 0, %s127
      %s147 = sphi 0, %s147
      %s149 = sphi 0, %s147
      %s150 = sphi 0, %s149
      %s164 = sphi 0, %s150
      %s168 = sphi 0, %s168
      %s170 = sphi 0, %s168
      %s171 = sphi 0, %s170
      %s185 = sphi 0, %s171
      %s191 = sphi 0, %s193
      %s194 = sphi 0, %s191
      %s195 = sphi 0, %s194
      %s211 = sphi 0, %s195
    $region4: #{tpu_custom_call.1} parent=1 // loop_header_branch
      %22 = sbr.rel (%p20) target = $region8
    $region5: #{tpu_custom_call.1} parent=1 // loop_body
      %s24 = ssub.s32 %s19, 1
      %s25 = ssub.s32 %s19, 2
      %s26 = sadd.s32 %s19, 1
      %s28 = sadd.s32 %s27, 1
      %p31 = scmp.eq.s32.totalorder %s19, 1
      %p32 = scmp.ne.s32.totalorder %s27, %s29
      %p33 = scmp.eq.s32.totalorder %s19, 0
      %p34 = por %p32, %p33
      %p35 = scmp.ne.s32.totalorder %s27, %s29
      %p36 = scmp.eq.s32.totalorder %s24, 1
      %p37 = por %p35, %p36
      %p38 = scmp.ne.s32.totalorder %s29, %s30
      %p39 = scmp.eq.s32.totalorder %s24, 0
      %p40 = por %p38, %p39
      %p41 = scmp.ne.s32.totalorder %s29, %s30
      %p42 = scmp.eq.s32.totalorder %s25, 1
      %p43 = por %p41, %p42
      %p45 = scmp.ne.s32.totalorder %s30, %s44
      %p46 = scmp.eq.s32.totalorder %s25, 0
      %p47 = por %p45, %p46
      %s49 = sadd.s32 %s48, 1
      %p52 = scmp.eq.s32.totalorder %s19, 1
      %p53 = scmp.ne.s32.totalorder %s48, %s50
      %p54 = scmp.eq.s32.totalorder %s19, 0
      %p55 = por %p53, %p54
      %p56 = scmp.ne.s32.totalorder %s48, %s50
      %p57 = scmp.eq.s32.totalorder %s24, 1
      %p58 = por %p56, %p57
      %p59 = scmp.ne.s32.totalorder %s50, %s51
      %p60 = scmp.eq.s32.totalorder %s24, 0
      %p61 = por %p59, %p60
      %p62 = scmp.ne.s32.totalorder %s50, %s51
      %p63 = scmp.eq.s32.totalorder %s25, 1
      %p64 = por %p62, %p63
      %p66 = scmp.ne.s32.totalorder %s51, %s65
      %p67 = scmp.eq.s32.totalorder %s25, 0
      %p68 = por %p66, %p67
      %s69 = ssub.s32 %s19, %s26
      %p70 = scmp.eq.s32.totalorder %s69, 0
      %s72 = sadd.s32 %s71, 1
      %s73 = scalar_select %p70, %s71, %s72
      %p76 = pneg %p70
      %p77 = scmp.eq.s32.totalorder %s19, 1
      %p78 = por %p76, %p77
      %p79 = scmp.ne.s32.totalorder %s71, %s74
      %p80 = scmp.eq.s32.totalorder %s19, 0
      %p81 = por %p79, %p80
      %p82 = scmp.ne.s32.totalorder %s71, %s74
      %p83 = scmp.eq.s32.totalorder %s24, 1
      %p84 = por %p82, %p83
      %p85 = scmp.ne.s32.totalorder %s74, %s75
      %p86 = scmp.eq.s32.totalorder %s24, 0
      %p87 = por %p85, %p86
      %p88 = scmp.ne.s32.totalorder %s74, %s75
      %p89 = scmp.eq.s32.totalorder %s25, 1
      %p90 = por %p88, %p89
      %p92 = scmp.ne.s32.totalorder %s75, %s91
      %p93 = scmp.eq.s32.totalorder %s25, 0
      %p94 = por %p92, %p93
      %s95 = ssub.s32 %s19, %s26
      %p96 = scmp.eq.s32.totalorder %s95, 0
      %s98 = sadd.s32 %s97, 1
      %s99 = scalar_select %p96, %s97, %s98
      %p102 = pneg %p96
      %p103 = scmp.eq.s32.totalorder %s19, 1
      %p104 = por %p102, %p103
      %p105 = scmp.ne.s32.totalorder %s97, %s100
      %p106 = scmp.eq.s32.totalorder %s19, 0
      %p107 = por %p105, %p106
      %p108 = scmp.ne.s32.totalorder %s97, %s100
      %p109 = scmp.eq.s32.totalorder %s24, 1
      %p110 = por %p108, %p109
      %p111 = scmp.ne.s32.totalorder %s100, %s101
      %p112 = scmp.eq.s32.totalorder %s24, 0
      %p113 = por %p111, %p112
      %p114 = scmp.ne.s32.totalorder %s100, %s101
      %p115 = scmp.eq.s32.totalorder %s25, 1
      %p116 = por %p114, %p115
      %p118 = scmp.ne.s32.totalorder %s101, %s117
      %p119 = scmp.eq.s32.totalorder %s25, 0
      %p120 = por %p118, %p119
      %s121 = ssub.s32 %s19, %s26
      %p122 = scmp.eq.s32.totalorder %s121, 0
      %s124 = sadd.s32 %s123, 1
      %s125 = scalar_select %p122, %s123, %s124
      %p128 = pneg %p122
      %p129 = scmp.eq.s32.totalorder %s19, 1
      %p130 = por %p128, %p129
      %p131 = scmp.ne.s32.totalorder %s123, %s126
      %p132 = scmp.eq.s32.totalorder %s19, 0
      %p133 = por %p131, %p132
      %p134 = scmp.ne.s32.totalorder %s123, %s126
      %p135 = scmp.eq.s32.totalorder %s24, 1
      %p136 = por %p134, %p135
      %p137 = scmp.ne.s32.totalorder %s126, %s127
      %p138 = scmp.eq.s32.totalorder %s24, 0
      %p139 = por %p137, %p138
      %p140 = scmp.ne.s32.totalorder %s126, %s127
      %p141 = scmp.eq.s32.totalorder %s25, 1
      %p142 = por %p140, %p141
      %p144 = scmp.ne.s32.totalorder %s127, %s143
      %p145 = scmp.eq.s32.totalorder %s25, 0
      %p146 = por %p144, %p145
      %s148 = sadd.s32 %s147, 1
      %p151 = scmp.eq.s32.totalorder %s19, 1
      %p152 = scmp.ne.s32.totalorder %s147, %s149
      %p153 = scmp.eq.s32.totalorder %s19, 0
      %p154 = por %p152, %p153
      %p155 = scmp.ne.s32.totalorder %s147, %s149
      %p156 = scmp.eq.s32.totalorder %s24, 1
      %p157 = por %p155, %p156
      %p158 = scmp.ne.s32.totalorder %s149, %s150
      %p159 = scmp.eq.s32.totalorder %s24, 0
      %p160 = por %p158, %p159
      %p161 = scmp.ne.s32.totalorder %s149, %s150
      %p162 = scmp.eq.s32.totalorder %s25, 1
      %p163 = por %p161, %p162
      %p165 = scmp.ne.s32.totalorder %s150, %s164
      %p166 = scmp.eq.s32.totalorder %s25, 0
      %p167 = por %p165, %p166
      %s169 = sadd.s32 %s168, 1
      %p172 = scmp.eq.s32.totalorder %s19, 1
      %p173 = scmp.ne.s32.totalorder %s168, %s170
      %p174 = scmp.eq.s32.totalorder %s19, 0
      %p175 = por %p173, %p174
      %p176 = scmp.ne.s32.totalorder %s168, %s170
      %p177 = scmp.eq.s32.totalorder %s24, 1
      %p178 = por %p176, %p177
      %p179 = scmp.ne.s32.totalorder %s170, %s171
      %p180 = scmp.eq.s32.totalorder %s24, 0
      %p181 = por %p179, %p180
      %p182 = scmp.ne.s32.totalorder %s170, %s171
      %p183 = scmp.eq.s32.totalorder %s25, 1
      %p184 = por %p182, %p183
      %p186 = scmp.ne.s32.totalorder %s171, %s185
      %p187 = scmp.eq.s32.totalorder %s25, 0
      %p188 = por %p186, %p187
      %s189 = ssub.s32 %s19, %s26
      %p190 = scmp.eq.s32.totalorder %s189, 0
      %s192 = sadd.s32 %s191, 1
      %s193 = scalar_select %p190, %s191, %s192
      %p196 = pneg %p190
      %p197 = scmp.eq.s32.totalorder %s19, 1
      %p198 = por %p196, %p197
      %p199 = scmp.ne.s32.totalorder %s191, %s194
      %p200 = scmp.eq.s32.totalorder %s19, 0
      %p201 = por %p199, %p200
      %p202 = scmp.ne.s32.totalorder %s191, %s194
      %p203 = scmp.eq.s32.totalorder %s24, 1
      %p204 = por %p202, %p203
      %p205 = scmp.ne.s32.totalorder %s194, %s195
      %p206 = scmp.eq.s32.totalorder %s24, 0
      %p207 = por %p205, %p206
      %p208 = scmp.ne.s32.totalorder %s194, %s195
      %p209 = scmp.eq.s32.totalorder %s25, 1
      %p210 = por %p208, %p209
      %p212 = scmp.ne.s32.totalorder %s195, %s211
      %p213 = scmp.eq.s32.totalorder %s25, 0
      %p214 = por %p212, %p213
      %p215 = scmp.le.s32.totalorder 1, %s19
      %p216 = scmp.lt.s32.totalorder %s19, 3
      %p217 = pnand %p215, %p216
      %p218 = pneg %p217
      // Predicated region
      $region9: #{tpu_custom_call.1} parent=5 // pred_check
        _
      $region10: #{tpu_custom_call.1} parent=5 // pred_check_branch
        %220 = sbr.rel (%p217) target = $region12
      $region11: #{tpu_custom_call.1} parent=5 // pred_region
        %s221 = ssub.s32 %s19, 1
        // Predicated region
        $region13: #{tpu_custom_call.1} parent=11 // pred_check
          %p222 = pneg %p40
        $region14: #{tpu_custom_call.1} parent=11 // pred_check_branch
          %224 = sbr.rel (%p222) target = $region16
        $region15: #{tpu_custom_call.1} parent=11 // pred_region
          _
        $region16: #{tpu_custom_call.1} parent=11 // pred_fallthru
          _
        // Predicated region
        $region17: #{tpu_custom_call.1} parent=11 // pred_check
          %p225 = pneg %p61
        $region18: #{tpu_custom_call.1} parent=11 // pred_check_branch
          %227 = sbr.rel (%p225) target = $region20
        $region19: #{tpu_custom_call.1} parent=11 // pred_region
          _
        $region20: #{tpu_custom_call.1} parent=11 // pred_fallthru
          _
        // Predicated region
        $region21: #{tpu_custom_call.1} parent=11 // pred_check
          %p228 = pneg %p160
        $region22: #{tpu_custom_call.1} parent=11 // pred_check_branch
          %230 = sbr.rel (%p228) target = $region24
        $region23: #{tpu_custom_call.1} parent=11 // pred_region
          _
        $region24: #{tpu_custom_call.1} parent=11 // pred_fallthru
          _
        // Predicated region
        $region25: #{tpu_custom_call.1} parent=11 // pred_check
          %p231 = pneg %p181
        $region26: #{tpu_custom_call.1} parent=11 // pred_check_branch
          %233 = sbr.rel (%p231) target = $region28
        $region27: #{tpu_custom_call.1} parent=11 // pred_region
          _
        $region28: #{tpu_custom_call.1} parent=11 // pred_fallthru
          _
      $region12: #{tpu_custom_call.1} parent=5 // pred_fallthru
        _
      %p234 = scmp.lt.s32.totalorder %s19, 2
      // Predicated region
      $region29: #{tpu_custom_call.1} parent=5 // pred_check
        %p235 = pneg %p234
      $region30: #{tpu_custom_call.1} parent=5 // pred_check_branch
        %237 = sbr.rel (%p235) target = $region32
      $region31: #{tpu_custom_call.1} parent=5 // pred_region
        // Predicated region
        $region33: #{tpu_custom_call.1} parent=31 // pred_check
          %p238 = pneg %p81
        $region34: #{tpu_custom_call.1} parent=31 // pred_check_branch
          %240 = sbr.rel (%p238) target = $region36
        $region35: #{tpu_custom_call.1} parent=31 // pred_region
          %s241 = smul.u32 2, %s19
          %p242 = scmp.lt.s32.totalorder %s241, 3
          %s243 = scalar_select %p242, %s241, 3
          %s244 = smul.addr %s243, 8
          %s245 = scalar_lea.vmem %s2, %s244
          %s246 = smul.u32 2, %s19
        $region36: #{tpu_custom_call.1} parent=31 // pred_fallthru
          _
        // Predicated region
        $region37: #{tpu_custom_call.1} parent=31 // pred_check
          %p247 = pneg %p107
        $region38: #{tpu_custom_call.1} parent=31 // pred_check_branch
          %249 = sbr.rel (%p247) target = $region40
        $region39: #{tpu_custom_call.1} parent=31 // pred_region
          #allocation7 [shape = 'u32[6]{0}', space=smem, size = 0x18, scoped, tag = 'DMA stride descriptor']
          %s250 = sand.u32 %s97, 1
          %s251 = scalar_lea.sflag [#allocation3], %s250
          %s252 = sand.u32 %s97, 1
          %s253 = smul.addr %s252, 64
          %s254 = scalar_lea.vmem [#allocation2], %s253
          %s255 = smul.u32 2, %s19
          %s257 = ssub.s32 1024, 1024
          %258 = vsyncadd %s251, %s257
          %s259 = smul.addr %s255, 128
          %s260 = scalar_lea.hbm %s3, %s259
          %s262 = sshll.u32 1, 14
          %s263 = sxor.u32 4294967295, %s262
          %s265 = sld [smem:[#allocation0]]
          %s266 = sadd.s32 2, %s265
          %s268 = sshll.u32 7, 26
          %s269 = sxor.u32 4294967295, %s268
          %s270 = sand.u32 0, %s269
          %s271 = sshll.u32 %s266, 26
          %s272 = sor.u32 %s270, %s271
          %s273 = sshll.u32 %s254, 4
          %s274 = int_to_ptr.vmem [resolvable:$true] %s273
          %280 = sst [smem:[#allocation7]] 512
          %s281 = scalar_lea.smem [#allocation7], 1
          %282 = sst [smem:[%s281]] 256
          %s283 = scalar_lea.smem [#allocation7], 2
          %284 = sst [smem:[%s283]] 2
          %s285 = scalar_lea.smem [#allocation7], 3
          %286 = sst [smem:[%s285]] 128
          %s287 = scalar_lea.smem [#allocation7], 4
          %288 = sst [smem:[%s287]] 128
          %s289 = scalar_lea.smem [#allocation7], 5
          %290 = sst [smem:[%s289]] 8
          %292 = dma.general %s260, 1024, %s274, %s251, [#allocation6], [#allocation7], %s272, 0
        $region40: #{tpu_custom_call.1} parent=31 // pred_fallthru
          _
        // Predicated region
        $region41: #{tpu_custom_call.1} parent=31 // pred_check
          %p293 = pneg %p133
        $region42: #{tpu_custom_call.1} parent=31 // pred_check_branch
          %295 = sbr.rel (%p293) target = $region44
        $region43: #{tpu_custom_call.1} parent=31 // pred_region
          %s296 = smul.u32 2, %s19
          %p297 = scmp.lt.s32.totalorder %s296, 3
          %s298 = scalar_select %p297, %s296, 3
          %s299 = smul.addr %s298, 8
          %s300 = scalar_lea.vmem %s4, %s299
          %s301 = smul.u32 2, %s19
        $region44: #{tpu_custom_call.1} parent=31 // pred_fallthru
          _
      $region32: #{tpu_custom_call.1} parent=5 // pred_fallthru
        _
      %p302 = scmp.le.s32.totalorder 1, %s19
      %p303 = scmp.lt.s32.totalorder %s19, 3
      %p304 = pnand %p302, %p303
      %p305 = pneg %p304
      // Predicated region
      $region45: #{tpu_custom_call.1} parent=5 // pred_check
        _
      $region46: #{tpu_custom_call.1} parent=5 // pred_check_branch
        %307 = sbr.rel (%p304) target = $region48
      $region47: #{tpu_custom_call.1} parent=5 // pred_region
        %s308 = ssub.s32 %s19, 1
        %s309 = sand.u32 %s100, 1
        %s310 = scalar_lea.sflag [#allocation3], %s309
        %s311 = sand.u32 %s100, 1
        %s312 = smul.addr %s311, 64
        %s313 = scalar_lea.vmem [#allocation2], %s312
        // Predicated region
        $region49: #{tpu_custom_call.1} parent=47 // pred_check
          %p314 = pneg %p113
        $region50: #{tpu_custom_call.1} parent=47 // pred_check_branch
          %316 = sbr.rel (%p314) target = $region52
        $region51: #{tpu_custom_call.1} parent=47 // pred_region
          %317 = dma.done %s310, 1024
        $region52: #{tpu_custom_call.1} parent=47 // pred_fallthru
          _
        %p318 = pneg %p40
        %p319 = pneg %p37
        %p320 = pneg %p61
        %p321 = pneg %p58
        %s322 = smul.u32 2, %s24
        %p323 = scmp.lt.s32.totalorder %s322, 3
        %s324 = scalar_select %p323, %s322, 3
        %s325 = smul.addr %s324, 8
        %s326 = scalar_lea.vmem %s2, %s325
        %p327 = pneg %p87
        %p328 = pneg %p84
        %s329 = sand.u32 %s100, 1
        %s330 = scalar_lea.sflag [#allocation3], %s329
        %s331 = sand.u32 %s100, 1
        %s332 = smul.addr %s331, 64
        %s333 = scalar_lea.vmem [#allocation2], %s332
        %p334 = pneg %p113
        %p335 = pneg %p110
        %s336 = smul.u32 2, %s24
        %p337 = scmp.lt.s32.totalorder %s336, 3
        %s338 = scalar_select %p337, %s336, 3
        %s339 = smul.addr %s338, 8
        %s340 = scalar_lea.vmem %s4, %s339
        %p341 = pneg %p139
        %p342 = pneg %p136
        %p343 = pneg %p160
        %p344 = pneg %p157
        %p345 = pneg %p181
        %p346 = pneg %p178
        %p347 = pneg %p207
        %p348 = pneg %p204
        %s349 = sand.u32 %s194, 1
        %s350 = scalar_lea.sflag [#allocation4], %s349
        %s351 = sand.u32 %s194, 1
        %s352 = smul.addr %s351, 16
        %s353 = scalar_lea.vmem [#allocation5], %s352
        %s354 = smul.u32 2, %s24
        %p355 = scmp.lt.s32.totalorder %s354, 3
        %s356 = scalar_select %p355, %s354, 3
        %s357 = smul.addr %s356, 8
        %s358 = scalar_lea.vmem %s2, %s357
        %s359 = smul.u32 2, %s24
        %s360 = smul.u32 2, %s24
        %s361 = smul.u32 2, %s24
        %p362 = scmp.lt.s32.totalorder %s361, 3
        %s363 = scalar_select %p362, %s361, 3
        %s364 = smul.addr %s363, 8
        %s365 = scalar_lea.vmem %s4, %s364
        %s366 = smul.u32 2, %s24
        %s367 = smul.u32 2, %s24
        %v368 = vld [vmem:[%s365] sm:$0xff]
        %v369 = vld [vmem:[%s365 + $0x8] sm:$0xff]
        %v370 = vld [vmem:[%s5] sm:$0xff]
        %v371 = vld [vmem:[%s6] sm:$0x1]
        %v372 = vmul.f32 %v371, 32.0
        %v374 = vlaneseq
        %v375 = vshrl.u32 %v374, 7
        %v376 = vsub.s32 0, %v375
        %v377 = vrot.slane %v372, %v376
        %vm379 = vcmask 64512
        %v381 = vsel %vm379, %v368, 0
        %v384 = vsel %vm379, %v369, 0
        %386 = vmatprep.subr.mxu0 0.0
        %387 = vmatpush1.msra.mxu0 %v370
        %388 = vmatprep.subr.mxu0 0.0
        %389 = vmatpush1.msra.mxu0 0.0
        %390 = vmatprep.subr.mxu0 0.0
        %391 = vmatpush1.msra.mxu0 0.0
        %392 = vmatprep.subr.mxu0 0.0
        %393 = vmatpush1.msra.mxu0 0.0
        %394 = vmatprep.subr.mxu0 0.0
        %395 = vmatpush1.msra.mxu0 0.0
        %396 = vmatprep.subr.mxu0 0.0
        %397 = vmatpush1.msra.mxu0 0.0
        %398 = vmatprep.subr.mxu0 0.0
        %399 = vmatpush1.msra.mxu0 0.0
        %400 = vmatprep.subr.mxu0 0.0
        %401 = vmatpush1.msra.mxu0 0.0
        %402 = vmatprep.subr.mxu0 0.0
        %403 = vmatpush1.msra.mxu0 0.0
        %404 = vmatprep.subr.mxu0 0.0
        %405 = vmatpush1.msra.mxu0 0.0
        %406 = vmatprep.subr.mxu0 0.0
        %407 = vmatpush1.msra.mxu0 0.0
        %408 = vmatprep.subr.mxu0 0.0
        %409 = vmatpush1.msra.mxu0 0.0
        %410 = vmatprep.subr.mxu0 0.0
        %411 = vmatpush1.msra.mxu0 0.0
        %412 = vmatprep.subr.mxu0 0.0
        %413 = vmatpush1.msra.mxu0 0.0
        %414 = vmatprep.subr.mxu0 0.0
        %415 = vmatpush1.msra.mxu0 0.0
        %416 = vmatprep.subr.mxu0 0.0
        %417 = vmatpush1.msra.mxu0 0.0
        %418 = vmatprep.subr.mxu0 0.0
        %419 = vmatpush1.msra.mxu0 0.0
        %420 = vmatprep.subr.mxu0 0.0
        %421 = vmatpush1.msra.mxu0 0.0
        %422 = vmatprep.subr.mxu0 0.0
        %423 = vmatpush1.msra.mxu0 0.0
        %424 = vmatprep.subr.mxu0 0.0
        %425 = vmatpush1.msra.mxu0 0.0
        %426 = vmatprep.subr.mxu0 0.0
        %427 = vmatpush1.msra.mxu0 0.0
        %428 = vmatprep.subr.mxu0 0.0
        %429 = vmatpush1.msra.mxu0 0.0
        %430 = vmatprep.subr.mxu0 0.0
        %431 = vmatpush1.msra.mxu0 0.0
        %432 = vmatprep.subr.mxu0 0.0
        %433 = vmatpush1.msra.mxu0 0.0
        %434 = vmatprep.subr.mxu0 0.0
        %435 = vmatpush1.msra.mxu0 0.0
        %436 = vmatprep.subr.mxu0 0.0
        %437 = vmatpush1.msra.mxu0 0.0
        %438 = vmatprep.subr.mxu0 0.0
        %439 = vmatpush1.msra.mxu0 0.0
        %440 = vmatprep.subr.mxu0 0.0
        %441 = vmatpush1.msra.mxu0 0.0
        %442 = vmatprep.subr.mxu0 0.0
        %443 = vmatpush1.msra.mxu0 0.0
        %444 = vmatprep.subr.mxu0 0.0
        %445 = vmatpush1.msra.mxu0 0.0
        %446 = vmatprep.subr.mxu0 0.0
        %447 = vmatpush1.msra.mxu0 0.0
        %448 = vmatprep.subr.mxu0 0.0
        %449 = vmatpush1.msra.mxu0 0.0
        %450 = vmatprep.mubr.f32.mxu0 0.0
        %451 = vmatmul.mubr.f32.gmra.mrb[0].mxu0 %v381
        %v452 = vpop.f32.mrb[0].mxu0
        %v453 = vadd.f32 %v377, %v452
        %v454 = vpop.f32.mrb[0].mxu0
        %455 = vmatprep.mubr.f32.mxu0 0.0
        %456 = vmatmul.mubr.f32.gmra.mrb[0].mxu0 %v384
        %v457 = vpop.f32.mrb[0].mxu0
        %v458 = vadd.f32 %v377, %v457
        %v459 = vpop.f32.mrb[0].mxu0
        %460 = vdwg.mxu0
        %v461 = vld [vmem:[%s0] sm:$0xff]
        %v462 = vld [vmem:[%s0 + $0x8] sm:$0xff]
        %v463 = vld [vmem:[%s0 + $0x10] sm:$0xff]
        %v464 = vld [vmem:[%s0 + $0x18] sm:$0xff]
        %v465 = vld [vmem:[%s1] sm:$0xf]
        %v466 = vld [vmem:[%s358] sm:$0xff]
        %v467 = vld [vmem:[%s358 + $0x8] sm:$0xff]
        %v468 = vlaneseq
        %v469 = vshrl.u32 %v468, 7
        %v470 = vsub.s32 0, %v469
        %v471 = vrot.slane %v465, %v470
        %473 = vset.pattern.permute.xlu0 0
        %474 = vperm.xlu0 %473, %v466
        %v475 = vpop.permute.xlu0 %474
        %478 = vset.pattern.permute.xlu0 0
        %479 = vperm.xlu0 %478, %v467
        %v480 = vpop.permute.xlu0 %479
        %v482 = vadd.f32 %v471, %v475
        %v483 = vadd.f32 %v471, %v480
        %v484 = vld [vmem:[%s313] sm:$0xff]
        %v485 = vld [vmem:[%s313 + $0x8] sm:$0xff]
        %v486 = vadd.f32 %v482, %v484
        %v487 = vadd.f32 %v483, %v485
        %vm488 = vcmp.gt.f32.partialorder %v486, 0.0
        %vm489 = vcmp.gt.f32.partialorder %v487, 0.0
        %v490 = vmul.f32 %v486, 0.2
        %v491 = vmul.f32 %v487, 0.2
        %v492 = vsel %vm488, %v486, %v490
        %v493 = vsel %vm489, %v487, %v491
        %vm494 = vcmask 261120
        %v495 = vsel %vm494, %v492, -inf
        %496 = vmax.xlane.f32.xlu0 %v495
        %v497 = vpop.xlane.xlu0 %496
        %v498 = vsel %vm494, %v493, -inf
        %499 = vmax.xlane.f32.xlu0 %v498
        %v500 = vpop.xlane.xlu0 %499
        %v501 = vsub.f32 %v492, %v497
        %v502 = vsub.f32 %v493, %v500
        %v503 = vmul.f32 %v501, 1.442695
        %v504 = vpow.pop %v503
        %v505 = vmul.f32 %v502, 1.442695
        %v506 = vpow.pop %v505
        %v507 = vsel %vm494, %v504, 0.0
        %508 = vadd.xlane.f32.xlu0 %v507
        %v509 = vpop.xlane.xlu0 %508
        %v510 = vsel %vm494, %v506, 0.0
        %511 = vadd.xlane.f32.xlu0 %v510
        %v512 = vpop.xlane.xlu0 %511
        %v513 = vrcp.pop %v509
        %v514 = vrcp.pop %v512
        %v515 = vmul.f32 %v504, %v513
        %v516 = vmul.f32 %v506, %v514
        %v518 = vsel %vm494, %v515, 0
        %v521 = vsel %vm494, %v516, 0
        %523 = vmatprep.subr.mxu0 0.0
        %524 = vmatpush1.msra.mxu0 %v461
        %525 = vmatprep.subr.mxu0 0.0
        %526 = vmatpush1.msra.mxu0 %v462
        %527 = vmatprep.subr.mxu0 0.0
        %528 = vmatpush1.msra.mxu0 %v463
        %529 = vmatprep.subr.mxu0 0.0
        %530 = vmatpush1.msra.mxu0 %v464
        %531 = vmatprep.subr.mxu0 0.0
        %532 = vmatpush1.msra.mxu0 0.0
        %533 = vmatprep.subr.mxu0 0.0
        %534 = vmatpush1.msra.mxu0 0.0
        %535 = vmatprep.subr.mxu0 0.0
        %536 = vmatpush1.msra.mxu0 0.0
        %537 = vmatprep.subr.mxu0 0.0
        %538 = vmatpush1.msra.mxu0 0.0
        %539 = vmatprep.subr.mxu0 0.0
        %540 = vmatpush1.msra.mxu0 0.0
        %541 = vmatprep.subr.mxu0 0.0
        %542 = vmatpush1.msra.mxu0 0.0
        %543 = vmatprep.subr.mxu0 0.0
        %544 = vmatpush1.msra.mxu0 0.0
        %545 = vmatprep.subr.mxu0 0.0
        %546 = vmatpush1.msra.mxu0 0.0
        %547 = vmatprep.subr.mxu0 0.0
        %548 = vmatpush1.msra.mxu0 0.0
        %549 = vmatprep.subr.mxu0 0.0
        %550 = vmatpush1.msra.mxu0 0.0
        %551 = vmatprep.subr.mxu0 0.0
        %552 = vmatpush1.msra.mxu0 0.0
        %553 = vmatprep.subr.mxu0 0.0
        %554 = vmatpush1.msra.mxu0 0.0
        %555 = vmatprep.subr.mxu0 0.0
        %556 = vmatpush1.msra.mxu0 0.0
        %557 = vmatprep.subr.mxu0 0.0
        %558 = vmatpush1.msra.mxu0 0.0
        %559 = vmatprep.subr.mxu0 0.0
        %560 = vmatpush1.msra.mxu0 0.0
        %561 = vmatprep.subr.mxu0 0.0
        %562 = vmatpush1.msra.mxu0 0.0
        %563 = vmatprep.subr.mxu0 0.0
        %564 = vmatpush1.msra.mxu0 0.0
        %565 = vmatprep.subr.mxu0 0.0
        %566 = vmatpush1.msra.mxu0 0.0
        %567 = vmatprep.subr.mxu0 0.0
        %568 = vmatpush1.msra.mxu0 0.0
        %569 = vmatprep.subr.mxu0 0.0
        %570 = vmatpush1.msra.mxu0 0.0
        %571 = vmatprep.subr.mxu0 0.0
        %572 = vmatpush1.msra.mxu0 0.0
        %573 = vmatprep.subr.mxu0 0.0
        %574 = vmatpush1.msra.mxu0 0.0
        %575 = vmatprep.subr.mxu0 0.0
        %576 = vmatpush1.msra.mxu0 0.0
        %577 = vmatprep.subr.mxu0 0.0
        %578 = vmatpush1.msra.mxu0 0.0
        %579 = vmatprep.subr.mxu0 0.0
        %580 = vmatpush1.msra.mxu0 0.0
        %581 = vmatprep.subr.mxu0 0.0
        %582 = vmatpush1.msra.mxu0 0.0
        %583 = vmatprep.subr.mxu0 0.0
        %584 = vmatpush1.msra.mxu0 0.0
        %585 = vmatprep.subr.mxu0 0.0
        %586 = vmatpush1.msra.mxu0 0.0
        %587 = vmatprep.mubr.f32.mxu0 0.0
        %588 = vmatmul.mubr.f32.gmra.mrb[0].mxu0 %v518
        %v589 = vpop.f32.mrb[0].mxu0
        %v590 = vadd.f32 0.0, %v589
        %v591 = vpop.f32.mrb[0].mxu0
        %592 = vmatprep.mubr.f32.mxu0 0.0
        %593 = vmatmul.mubr.f32.gmra.mrb[0].mxu0 %v521
        %v594 = vpop.f32.mrb[0].mxu0
        %v595 = vadd.f32 0.0, %v594
        %v596 = vpop.f32.mrb[0].mxu0
        %597 = vdwg.mxu0
        %v598 = vlaneseq
        %v599 = vshrl.u32 %v598, 7
        %v600 = vsub.s32 1, %v599
        %v601 = vrot.slane %v465, %v600
        %602 = vset.pattern.permute.xlu0 1
        %603 = vperm.xlu0 %602, %v466
        %v604 = vpop.permute.xlu0 %603
        %606 = vset.pattern.permute.xlu0 1
        %607 = vperm.xlu0 %606, %v467
        %v608 = vpop.permute.xlu0 %607
        %v610 = vadd.f32 %v601, %v604
        %v611 = vadd.f32 %v601, %v608
        %s612 = scalar_lea.vmem %s313, 16 [#allocation2]
        %v613 = vld [vmem:[%s612] sm:$0xff]
        %v614 = vld [vmem:[%s612 + $0x8] sm:$0xff]
        %v615 = vadd.f32 %v610, %v613
        %v616 = vadd.f32 %v611, %v614
        %vm617 = vcmp.gt.f32.partialorder %v615, 0.0
        %vm618 = vcmp.gt.f32.partialorder %v616, 0.0
        %v619 = vmul.f32 %v615, 0.2
        %v620 = vmul.f32 %v616, 0.2
        %v621 = vsel %vm617, %v615, %v619
        %v622 = vsel %vm618, %v616, %v620
        %v623 = vsel %vm494, %v621, -inf
        %624 = vmax.xlane.f32.xlu0 %v623
        %v625 = vpop.xlane.xlu0 %624
        %v626 = vsel %vm494, %v622, -inf
        %627 = vmax.xlane.f32.xlu0 %v626
        %v628 = vpop.xlane.xlu0 %627
        %v629 = vsub.f32 %v621, %v625
        %v630 = vsub.f32 %v622, %v628
        %v631 = vmul.f32 %v629, 1.442695
        %v632 = vpow.pop %v631
        %v633 = vmul.f32 %v630, 1.442695
        %v634 = vpow.pop %v633
        %v635 = vsel %vm494, %v632, 0.0
        %636 = vadd.xlane.f32.xlu0 %v635
        %v637 = vpop.xlane.xlu0 %636
        %v638 = vsel %vm494, %v634, 0.0
        %639 = vadd.xlane.f32.xlu0 %v638
        %v640 = vpop.xlane.xlu0 %639
        %v641 = vrcp.pop %v637
        %v642 = vrcp.pop %v640
        %v643 = vmul.f32 %v632, %v641
        %v644 = vmul.f32 %v634, %v642
        %649 = vrot.lane.b32.xlu0 %v461, 112
        %v650 = vpop.permute.xlu0 %649
        %651 = vrot.lane.b32.xlu0 %v462, 112
        %v652 = vpop.permute.xlu0 %651
        %653 = vrot.lane.b32.xlu0 %v463, 112
        %v654 = vpop.permute.xlu0 %653
        %655 = vrot.lane.b32.xlu0 %v464, 112
        %v656 = vpop.permute.xlu0 %655
        %v662 = vsel %vm494, %v643, 0
        %v665 = vsel %vm494, %v644, 0
        %667 = vmatprep.subr.mxu0 0.0
        %668 = vmatpush1.msra.mxu0 %v650
        %669 = vmatprep.subr.mxu0 0.0
        %670 = vmatpush1.msra.mxu0 %v652
        %671 = vmatprep.subr.mxu0 0.0
        %672 = vmatpush1.msra.mxu0 %v654
        %673 = vmatprep.subr.mxu0 0.0
        %674 = vmatpush1.msra.mxu0 %v656
        %675 = vmatprep.subr.mxu0 0.0
        %676 = vmatpush1.msra.mxu0 0.0
        %677 = vmatprep.subr.mxu0 0.0
        %678 = vmatpush1.msra.mxu0 0.0
        %679 = vmatprep.subr.mxu0 0.0
        %680 = vmatpush1.msra.mxu0 0.0
        %681 = vmatprep.subr.mxu0 0.0
        %682 = vmatpush1.msra.mxu0 0.0
        %683 = vmatprep.subr.mxu0 0.0
        %684 = vmatpush1.msra.mxu0 0.0
        %685 = vmatprep.subr.mxu0 0.0
        %686 = vmatpush1.msra.mxu0 0.0
        %687 = vmatprep.subr.mxu0 0.0
        %688 = vmatpush1.msra.mxu0 0.0
        %689 = vmatprep.subr.mxu0 0.0
        %690 = vmatpush1.msra.mxu0 0.0
        %691 = vmatprep.subr.mxu0 0.0
        %692 = vmatpush1.msra.mxu0 0.0
        %693 = vmatprep.subr.mxu0 0.0
        %694 = vmatpush1.msra.mxu0 0.0
        %695 = vmatprep.subr.mxu0 0.0
        %696 = vmatpush1.msra.mxu0 0.0
        %697 = vmatprep.subr.mxu0 0.0
        %698 = vmatpush1.msra.mxu0 0.0
        %699 = vmatprep.subr.mxu0 0.0
        %700 = vmatpush1.msra.mxu0 0.0
        %701 = vmatprep.subr.mxu0 0.0
        %702 = vmatpush1.msra.mxu0 0.0
        %703 = vmatprep.subr.mxu0 0.0
        %704 = vmatpush1.msra.mxu0 0.0
        %705 = vmatprep.subr.mxu0 0.0
        %706 = vmatpush1.msra.mxu0 0.0
        %707 = vmatprep.subr.mxu0 0.0
        %708 = vmatpush1.msra.mxu0 0.0
        %709 = vmatprep.subr.mxu0 0.0
        %710 = vmatpush1.msra.mxu0 0.0
        %711 = vmatprep.subr.mxu0 0.0
        %712 = vmatpush1.msra.mxu0 0.0
        %713 = vmatprep.subr.mxu0 0.0
        %714 = vmatpush1.msra.mxu0 0.0
        %715 = vmatprep.subr.mxu0 0.0
        %716 = vmatpush1.msra.mxu0 0.0
        %717 = vmatprep.subr.mxu0 0.0
        %718 = vmatpush1.msra.mxu0 0.0
        %719 = vmatprep.subr.mxu0 0.0
        %720 = vmatpush1.msra.mxu0 0.0
        %721 = vmatprep.subr.mxu0 0.0
        %722 = vmatpush1.msra.mxu0 0.0
        %723 = vmatprep.subr.mxu0 0.0
        %724 = vmatpush1.msra.mxu0 0.0
        %725 = vmatprep.subr.mxu0 0.0
        %726 = vmatpush1.msra.mxu0 0.0
        %727 = vmatprep.subr.mxu0 0.0
        %728 = vmatpush1.msra.mxu0 0.0
        %729 = vmatprep.subr.mxu0 0.0
        %730 = vmatpush1.msra.mxu0 0.0
        %731 = vmatprep.mubr.f32.mxu0 0.0
        %732 = vmatmul.mubr.f32.gmra.mrb[0].mxu0 %v662
        %v733 = vpop.f32.mrb[0].mxu0
        %v734 = vadd.f32 0.0, %v733
        %v735 = vpop.f32.mrb[0].mxu0
        %736 = vmatprep.mubr.f32.mxu0 0.0
        %737 = vmatmul.mubr.f32.gmra.mrb[0].mxu0 %v665
        %v738 = vpop.f32.mrb[0].mxu0
        %v739 = vadd.f32 0.0, %v738
        %v740 = vpop.f32.mrb[0].mxu0
        %741 = vdwg.mxu0
        %v742 = vlaneseq
        %v743 = vshrl.u32 %v742, 7
        %v744 = vsub.s32 2, %v743
        %v745 = vrot.slane %v465, %v744
        %746 = vset.pattern.permute.xlu0 2
        %747 = vperm.xlu0 %746, %v466
        %v748 = vpop.permute.xlu0 %747
        %750 = vset.pattern.permute.xlu0 2
        %751 = vperm.xlu0 %750, %v467
        %v752 = vpop.permute.xlu0 %751
        %v754 = vadd.f32 %v745, %v748
        %v755 = vadd.f32 %v745, %v752
        %s756 = scalar_lea.vmem %s313, 32 [#allocation2]
        %v757 = vld [vmem:[%s756] sm:$0xff]
        %v758 = vld [vmem:[%s756 + $0x8] sm:$0xff]
        %v759 = vadd.f32 %v754, %v757
        %v760 = vadd.f32 %v755, %v758
        %vm761 = vcmp.gt.f32.partialorder %v759, 0.0
        %vm762 = vcmp.gt.f32.partialorder %v760, 0.0
        %v763 = vmul.f32 %v759, 0.2
        %v764 = vmul.f32 %v760, 0.2
        %v765 = vsel %vm761, %v759, %v763
        %v766 = vsel %vm762, %v760, %v764
        %v767 = vsel %vm494, %v765, -inf
        %768 = vmax.xlane.f32.xlu0 %v767
        %v769 = vpop.xlane.xlu0 %768
        %v770 = vsel %vm494, %v766, -inf
        %771 = vmax.xlane.f32.xlu0 %v770
        %v772 = vpop.xlane.xlu0 %771
        %v773 = vsub.f32 %v765, %v769
        %v774 = vsub.f32 %v766, %v772
        %v775 = vmul.f32 %v773, 1.442695
        %v776 = vpow.pop %v775
        %v777 = vmul.f32 %v774, 1.442695
        %v778 = vpow.pop %v777
        %v779 = vsel %vm494, %v776, 0.0
        %780 = vadd.xlane.f32.xlu0 %v779
        %v781 = vpop.xlane.xlu0 %780
        %v782 = vsel %vm494, %v778, 0.0
        %783 = vadd.xlane.f32.xlu0 %v782
        %v784 = vpop.xlane.xlu0 %783
        %v785 = vrcp.pop %v781
        %v786 = vrcp.pop %v784
        %v787 = vmul.f32 %v776, %v785
        %v788 = vmul.f32 %v778, %v786
        %789 = vrot.lane.b32.xlu0 %v461, 96
        %v790 = vpop.permute.xlu0 %789
        %791 = vrot.lane.b32.xlu0 %v462, 96
        %v792 = vpop.permute.xlu0 %791
        %793 = vrot.lane.b32.xlu0 %v463, 96
        %v794 = vpop.permute.xlu0 %793
        %795 = vrot.lane.b32.xlu0 %v464, 96
        %v796 = vpop.permute.xlu0 %795
        %v802 = vsel %vm494, %v787, 0
        %v805 = vsel %vm494, %v788, 0
        %807 = vmatprep.subr.mxu0 0.0
        %808 = vmatpush1.msra.mxu0 %v790
        %809 = vmatprep.subr.mxu0 0.0
        %810 = vmatpush1.msra.mxu0 %v792
        %811 = vmatprep.subr.mxu0 0.0
        %812 = vmatpush1.msra.mxu0 %v794
        %813 = vmatprep.subr.mxu0 0.0
        %814 = vmatpush1.msra.mxu0 %v796
        %815 = vmatprep.subr.mxu0 0.0
        %816 = vmatpush1.msra.mxu0 0.0
        %817 = vmatprep.subr.mxu0 0.0
        %818 = vmatpush1.msra.mxu0 0.0
        %819 = vmatprep.subr.mxu0 0.0
        %820 = vmatpush1.msra.mxu0 0.0
        %821 = vmatprep.subr.mxu0 0.0
        %822 = vmatpush1.msra.mxu0 0.0
        %823 = vmatprep.subr.mxu0 0.0
        %824 = vmatpush1.msra.mxu0 0.0
        %825 = vmatprep.subr.mxu0 0.0
        %826 = vmatpush1.msra.mxu0 0.0
        %827 = vmatprep.subr.mxu0 0.0
        %828 = vmatpush1.msra.mxu0 0.0
        %829 = vmatprep.subr.mxu0 0.0
        %830 = vmatpush1.msra.mxu0 0.0
        %831 = vmatprep.subr.mxu0 0.0
        %832 = vmatpush1.msra.mxu0 0.0
        %833 = vmatprep.subr.mxu0 0.0
        %834 = vmatpush1.msra.mxu0 0.0
        %835 = vmatprep.subr.mxu0 0.0
        %836 = vmatpush1.msra.mxu0 0.0
        %837 = vmatprep.subr.mxu0 0.0
        %838 = vmatpush1.msra.mxu0 0.0
        %839 = vmatprep.subr.mxu0 0.0
        %840 = vmatpush1.msra.mxu0 0.0
        %841 = vmatprep.subr.mxu0 0.0
        %842 = vmatpush1.msra.mxu0 0.0
        %843 = vmatprep.subr.mxu0 0.0
        %844 = vmatpush1.msra.mxu0 0.0
        %845 = vmatprep.subr.mxu0 0.0
        %846 = vmatpush1.msra.mxu0 0.0
        %847 = vmatprep.subr.mxu0 0.0
        %848 = vmatpush1.msra.mxu0 0.0
        %849 = vmatprep.subr.mxu0 0.0
        %850 = vmatpush1.msra.mxu0 0.0
        %851 = vmatprep.subr.mxu0 0.0
        %852 = vmatpush1.msra.mxu0 0.0
        %853 = vmatprep.subr.mxu0 0.0
        %854 = vmatpush1.msra.mxu0 0.0
        %855 = vmatprep.subr.mxu0 0.0
        %856 = vmatpush1.msra.mxu0 0.0
        %857 = vmatprep.subr.mxu0 0.0
        %858 = vmatpush1.msra.mxu0 0.0
        %859 = vmatprep.subr.mxu0 0.0
        %860 = vmatpush1.msra.mxu0 0.0
        %861 = vmatprep.subr.mxu0 0.0
        %862 = vmatpush1.msra.mxu0 0.0
        %863 = vmatprep.subr.mxu0 0.0
        %864 = vmatpush1.msra.mxu0 0.0
        %865 = vmatprep.subr.mxu0 0.0
        %866 = vmatpush1.msra.mxu0 0.0
        %867 = vmatprep.subr.mxu0 0.0
        %868 = vmatpush1.msra.mxu0 0.0
        %869 = vmatprep.subr.mxu0 0.0
        %870 = vmatpush1.msra.mxu0 0.0
        %871 = vmatprep.mubr.f32.mxu0 0.0
        %872 = vmatmul.mubr.f32.gmra.mrb[0].mxu0 %v802
        %v873 = vpop.f32.mrb[0].mxu0
        %v874 = vadd.f32 0.0, %v873
        %v875 = vpop.f32.mrb[0].mxu0
        %876 = vmatprep.mubr.f32.mxu0 0.0
        %877 = vmatmul.mubr.f32.gmra.mrb[0].mxu0 %v805
        %v878 = vpop.f32.mrb[0].mxu0
        %v879 = vadd.f32 0.0, %v878
        %v880 = vpop.f32.mrb[0].mxu0
        %881 = vdwg.mxu0
        %v882 = vlaneseq
        %v883 = vshrl.u32 %v882, 7
        %v884 = vsub.s32 3, %v883
        %v885 = vrot.slane %v465, %v884
        %886 = vset.pattern.permute.xlu0 3
        %887 = vperm.xlu0 %886, %v466
        %v888 = vpop.permute.xlu0 %887
        %890 = vset.pattern.permute.xlu0 3
        %891 = vperm.xlu0 %890, %v467
        %v892 = vpop.permute.xlu0 %891
        %v894 = vadd.f32 %v885, %v888
        %v895 = vadd.f32 %v885, %v892
        %s896 = scalar_lea.vmem %s313, 48 [#allocation2]
        %v897 = vld [vmem:[%s896] sm:$0xff]
        %v898 = vld [vmem:[%s896 + $0x8] sm:$0xff]
        %v899 = vadd.f32 %v894, %v897
        %v900 = vadd.f32 %v895, %v898
        %vm901 = vcmp.gt.f32.partialorder %v899, 0.0
        %vm902 = vcmp.gt.f32.partialorder %v900, 0.0
        %v903 = vmul.f32 %v899, 0.2
        %v904 = vmul.f32 %v900, 0.2
        %v905 = vsel %vm901, %v899, %v903
        %v906 = vsel %vm902, %v900, %v904
        %v907 = vsel %vm494, %v905, -inf
        %908 = vmax.xlane.f32.xlu0 %v907
        %v909 = vpop.xlane.xlu0 %908
        %v910 = vsel %vm494, %v906, -inf
        %911 = vmax.xlane.f32.xlu0 %v910
        %v912 = vpop.xlane.xlu0 %911
        %v913 = vsub.f32 %v905, %v909
        %v914 = vsub.f32 %v906, %v912
        %v915 = vmul.f32 %v913, 1.442695
        %v916 = vpow.pop %v915
        %v917 = vmul.f32 %v914, 1.442695
        %v918 = vpow.pop %v917
        %v919 = vsel %vm494, %v916, 0.0
        %920 = vadd.xlane.f32.xlu0 %v919
        %v921 = vpop.xlane.xlu0 %920
        %v922 = vsel %vm494, %v918, 0.0
        %923 = vadd.xlane.f32.xlu0 %v922
        %v924 = vpop.xlane.xlu0 %923
        %v925 = vrcp.pop %v921
        %v926 = vrcp.pop %v924
        %v927 = vmul.f32 %v916, %v925
        %v928 = vmul.f32 %v918, %v926
        %929 = vrot.lane.b32.xlu0 %v461, 80
        %v930 = vpop.permute.xlu0 %929
        %931 = vrot.lane.b32.xlu0 %v462, 80
        %v932 = vpop.permute.xlu0 %931
        %933 = vrot.lane.b32.xlu0 %v463, 80
        %v934 = vpop.permute.xlu0 %933
        %935 = vrot.lane.b32.xlu0 %v464, 80
        %v936 = vpop.permute.xlu0 %935
        %v942 = vsel %vm494, %v927, 0
        %v945 = vsel %vm494, %v928, 0
        %947 = vmatprep.subr.mxu0 0.0
        %948 = vmatpush1.msra.mxu0 %v930
        %949 = vmatprep.subr.mxu0 0.0
        %950 = vmatpush1.msra.mxu0 %v932
        %951 = vmatprep.subr.mxu0 0.0
        %952 = vmatpush1.msra.mxu0 %v934
        %953 = vmatprep.subr.mxu0 0.0
        %954 = vmatpush1.msra.mxu0 %v936
        %955 = vmatprep.subr.mxu0 0.0
        %956 = vmatpush1.msra.mxu0 0.0
        %957 = vmatprep.subr.mxu0 0.0
        %958 = vmatpush1.msra.mxu0 0.0
        %959 = vmatprep.subr.mxu0 0.0
        %960 = vmatpush1.msra.mxu0 0.0
        %961 = vmatprep.subr.mxu0 0.0
        %962 = vmatpush1.msra.mxu0 0.0
        %963 = vmatprep.subr.mxu0 0.0
        %964 = vmatpush1.msra.mxu0 0.0
        %965 = vmatprep.subr.mxu0 0.0
        %966 = vmatpush1.msra.mxu0 0.0
        %967 = vmatprep.subr.mxu0 0.0
        %968 = vmatpush1.msra.mxu0 0.0
        %969 = vmatprep.subr.mxu0 0.0
        %970 = vmatpush1.msra.mxu0 0.0
        %971 = vmatprep.subr.mxu0 0.0
        %972 = vmatpush1.msra.mxu0 0.0
        %973 = vmatprep.subr.mxu0 0.0
        %974 = vmatpush1.msra.mxu0 0.0
        %975 = vmatprep.subr.mxu0 0.0
        %976 = vmatpush1.msra.mxu0 0.0
        %977 = vmatprep.subr.mxu0 0.0
        %978 = vmatpush1.msra.mxu0 0.0
        %979 = vmatprep.subr.mxu0 0.0
        %980 = vmatpush1.msra.mxu0 0.0
        %981 = vmatprep.subr.mxu0 0.0
        %982 = vmatpush1.msra.mxu0 0.0
        %983 = vmatprep.subr.mxu0 0.0
        %984 = vmatpush1.msra.mxu0 0.0
        %985 = vmatprep.subr.mxu0 0.0
        %986 = vmatpush1.msra.mxu0 0.0
        %987 = vmatprep.subr.mxu0 0.0
        %988 = vmatpush1.msra.mxu0 0.0
        %989 = vmatprep.subr.mxu0 0.0
        %990 = vmatpush1.msra.mxu0 0.0
        %991 = vmatprep.subr.mxu0 0.0
        %992 = vmatpush1.msra.mxu0 0.0
        %993 = vmatprep.subr.mxu0 0.0
        %994 = vmatpush1.msra.mxu0 0.0
        %995 = vmatprep.subr.mxu0 0.0
        %996 = vmatpush1.msra.mxu0 0.0
        %997 = vmatprep.subr.mxu0 0.0
        %998 = vmatpush1.msra.mxu0 0.0
        %999 = vmatprep.subr.mxu0 0.0
        %1000 = vmatpush1.msra.mxu0 0.0
        %1001 = vmatprep.subr.mxu0 0.0
        %1002 = vmatpush1.msra.mxu0 0.0
        %1003 = vmatprep.subr.mxu0 0.0
        %1004 = vmatpush1.msra.mxu0 0.0
        %1005 = vmatprep.subr.mxu0 0.0
        %1006 = vmatpush1.msra.mxu0 0.0
        %1007 = vmatprep.subr.mxu0 0.0
        %1008 = vmatpush1.msra.mxu0 0.0
        %1009 = vmatprep.subr.mxu0 0.0
        %1010 = vmatpush1.msra.mxu0 0.0
        %1011 = vmatprep.mubr.f32.mxu0 0.0
        %1012 = vmatmul.mubr.f32.gmra.mrb[0].mxu0 %v942
        %v1013 = vpop.f32.mrb[0].mxu0
        %v1014 = vadd.f32 0.0, %v1013
        %v1015 = vpop.f32.mrb[0].mxu0
        %1016 = vmatprep.mubr.f32.mxu0 0.0
        %1017 = vmatmul.mubr.f32.gmra.mrb[0].mxu0 %v945
        %v1018 = vpop.f32.mrb[0].mxu0
        %v1019 = vadd.f32 0.0, %v1018
        %v1020 = vpop.f32.mrb[0].mxu0
        %1021 = vdwg.mxu0
        %1024 = vrot.lane.b32.xlu0 %v734, 16
        %v1025 = vpop.permute.xlu0 %1024
        %1026 = vrot.lane.b32.xlu0 %v739, 16
        %v1027 = vpop.permute.xlu0 %1026
        %1032 = vrot.lane.b32.xlu0 %v874, 32
        %v1033 = vpop.permute.xlu0 %1032
        %1034 = vrot.lane.b32.xlu0 %v879, 32
        %v1035 = vpop.permute.xlu0 %1034
        %1040 = vrot.lane.b32.xlu0 %v1014, 48
        %v1041 = vpop.permute.xlu0 %1040
        %1042 = vrot.lane.b32.xlu0 %v1019, 48
        %v1043 = vpop.permute.xlu0 %1042
        %vm1046 = vcmask 130048
        %v1047 = vsel %vm1046, %v590, %v1025
        %v1048 = vsel %vm1046, %v595, %v1027
        %v1049 = vsel %vm494, %v1047, %v1033
        %v1050 = vsel %vm494, %v1048, %v1035
        %vm1051 = vcmask 392192
        %v1052 = vsel %vm1051, %v1049, %v1041
        %v1053 = vsel %vm1051, %v1050, %v1043
        %v1054 = vadd.f32 %v1052, %v453
        %v1055 = vadd.f32 %v1053, %v458
        %vm1056 = vcmask 523264
        %1057 = vst.msk [vmem:[%s353] sm:$0xff] %vm1056, %v1054
        %1058 = vst.msk [vmem:[%s353 + $0x8] sm:$0xff] %vm1056, %v1055
        %s1059 = sand.u32 %s194, 1
        %s1060 = scalar_lea.sflag [#allocation4], %s1059
        %s1061 = sand.u32 %s194, 1
        %s1062 = smul.addr %s1061, 16
        %s1063 = scalar_lea.vmem [#allocation5], %s1062
        // Predicated region
        $region53: #{tpu_custom_call.1} parent=47 // pred_check
          %p1064 = pneg %p204
        $region54: #{tpu_custom_call.1} parent=47 // pred_check_branch
          %1066 = sbr.rel (%p1064) target = $region56
        $region55: #{tpu_custom_call.1} parent=47 // pred_region
          %s1067 = smul.u32 2, %s24
          %s1069 = ssub.s32 256, 256
          %1070 = vsyncadd %s1060, %s1069
          %s1071 = smul.addr %s1067, 128
          %s1072 = scalar_lea.hbm %s7, %s1071
          %s1073 = sshll.u32 %s1063, 4
          %s1074 = int_to_ptr.vmem [resolvable:$true] %s1073
          %1079 = dma.vmem_to_hbm [thread:$0]  %s1074, 256, %s1072, %s1060, 128, 128, 8
        $region56: #{tpu_custom_call.1} parent=47 // pred_fallthru
          _
      $region48: #{tpu_custom_call.1} parent=5 // pred_fallthru
        _
      %p1080 = scmp.le.s32.totalorder 2, %s19
      // Predicated region
      $region57: #{tpu_custom_call.1} parent=5 // pred_check
        %p1081 = pneg %p1080
      $region58: #{tpu_custom_call.1} parent=5 // pred_check_branch
        %1083 = sbr.rel (%p1081) target = $region60
      $region59: #{tpu_custom_call.1} parent=5 // pred_region
        %s1084 = ssub.s32 %s19, 2
        // Predicated region
        $region61: #{tpu_custom_call.1} parent=59 // pred_check
          %p1085 = pneg %p210
        $region62: #{tpu_custom_call.1} parent=59 // pred_check_branch
          %1087 = sbr.rel (%p1085) target = $region64
        $region63: #{tpu_custom_call.1} parent=59 // pred_region
          %s1088 = sand.u32 %s195, 1
          %s1089 = scalar_lea.sflag [#allocation4], %s1088
          %s1090 = sand.u32 %s195, 1
          %s1091 = smul.addr %s1090, 16
          %s1092 = scalar_lea.vmem [#allocation5], %s1091
          %1093 = dma.done %s1089, 256
        $region64: #{tpu_custom_call.1} parent=59 // pred_fallthru
          _
      $region60: #{tpu_custom_call.1} parent=5 // pred_fallthru
        _
    $region6: #{tpu_custom_call.1} parent=1 // loop_footer
      %s23 = sadd.s32 1, %s19
    $region7: #{tpu_custom_call.1} parent=1 // loop_footer_branch
      %18 = sbr.rel target = $region3
    $region8: #{tpu_custom_call.1} parent=1 // loop_exit
      _
    %1094 = vsyncpa [#allocation3], 1
    %s1095 = scalar_lea.sflag [#allocation3], 1
    %1096 = vsyncpa %s1095, 1
    %1097 = vsyncpa [#allocation4], 1
    %s1098 = scalar_lea.sflag [#allocation4], 1
    %1099 = vsyncpa %s1098, 1

</llo_original>
